<compile_context>
chip_gen: v5e
topology: v5e:2x2
jax: 0.10.0
libtpu: 0.0.40
codegen_flags: <defaults>
</compile_context>

<pallas_src>
import functools

import jax
import jax.numpy as jnp
import numpy as np
from jax.experimental import pallas as pl
from jax.experimental.pallas import tpu as pltpu


def _encoder_layer_kernel(
    x_ref, wqkv_ref, bqkv_ref,
    g1_ref, be1_ref, w1_ref, b1_ref, w2_ref, b2_ref, g2_ref, be2_ref,
    out_ref, *, num_heads, eps, compute_dtype, approx_recip,
):
    x = x_ref[...]                                   # (N, D) float32
    N, D = x.shape
    H = num_heads
    da = D // H

    # --- fused QKV projection: single (N,D)x(D,3D) MXU matmul (wide lane output) ---
    # 1/sqrt(da) attention scale is already folded into the Q slice of wqkv/bqkv.
    qkv_f32 = jnp.dot(x.astype(compute_dtype), wqkv_ref[...],
                      preferred_element_type=jnp.float32) + bqkv_ref[...]
    qkv = qkv_f32.astype(compute_dtype)              # single cast of the whole slab

    # --- split heads into (H, N, da): leading-axis stack of static lane slices ---
    def heads(base):
        return jnp.stack(
            [qkv[:, base + h * da: base + (h + 1) * da] for h in range(H)], axis=0)

    q = heads(0)          # (H, N, da), pre-scaled, compute dtype
    k = heads(D)
    v = heads(2 * D)

    # --- batched multi-head attention (softmax math in f32) ---
    s = jnp.einsum("hnd,hmd->hnm", q, k,
                   preferred_element_type=jnp.float32)           # (H, N, N) f32
    s = s - jnp.max(s, axis=-1, keepdims=True)
    p = jnp.exp(s)
    p = p * pl.reciprocal(jnp.sum(p, axis=-1, keepdims=True), approx=approx_recip)
    p = p.astype(compute_dtype)                                  # shrink (H,N,N) buffer
    ctx_h = jnp.einsum("hnm,hmd->hnd", p, v,
                       preferred_element_type=jnp.float32)       # (H, N, da) f32
    ctx = jnp.concatenate([ctx_h[h] for h in range(H)], axis=-1)  # (N, D)

    # --- residual + BatchNorm1d (batch statistics over tokens), single reduction pass ---
    # TODO(synk): dropout_attn / dropout_ffn / FFN dropout are identity (inference).
    inv_n = 1.0 / N
    r1 = x + ctx
    m1 = jnp.sum(r1, axis=0, keepdims=True) * inv_n
    v1 = jnp.maximum(jnp.sum(r1 * r1, axis=0, keepdims=True) * inv_n - m1 * m1, 0.0)
    scale1 = jax.lax.rsqrt(v1 + eps) * g1_ref[...]               # (1, D)
    n1 = (r1 - m1) * scale1 + be1_ref[...]

    # --- FFN: Linear -> ReLU -> Linear ---
    h1 = jnp.dot(n1.astype(compute_dtype), w1_ref[...],
                 preferred_element_type=jnp.float32) + b1_ref[...]
    h1 = jnp.maximum(h1, 0.0)
    ffn = jnp.dot(h1.astype(compute_dtype), w2_ref[...],
                  preferred_element_type=jnp.float32) + b2_ref[...]

    # --- residual + BatchNorm1d ---
    r2 = n1 + ffn
    m2 = jnp.sum(r2, axis=0, keepdims=True) * inv_n
    v2 = jnp.maximum(jnp.sum(r2 * r2, axis=0, keepdims=True) * inv_n - m2 * m2, 0.0)
    scale2 = jax.lax.rsqrt(v2 + eps) * g2_ref[...]
    out_ref[...] = (r2 - m2) * scale2 + be2_ref[...]


def _vmem_limit_bytes(N, D, Dff, H, compute_itemsize):
    """Rough vreg-padded (8,128) footprint of all in-kernel buffers, clamped to a
    per-generation VMEM cap (queried from the hardware when possible)."""
    def tile(r, c, b=4):
        return ((r + 7) // 8) * 8 * ((c + 127) // 128) * 128 * b

    da = max(D // H, 1)
    cb = int(compute_itemsize)
    est = (
        6 * tile(N, D)                            # x, ctx, r1, n1, r2, out (f32)
        + tile(D, 3 * D, cb) + tile(1, 3 * D)     # fused QKV weight + bias
        + tile(N, 3 * D) + tile(N, 3 * D, cb)     # qkv f32 + compute-dtype slab
        + 4 * H * tile(N, da, cb)                 # q, k, v, ctx per head
        + 2 * H * tile(N, N) + H * tile(N, N, cb)  # scores / probs (f32 + cast)
        + 2 * tile(N, Dff) + tile(N, Dff, cb)     # h1 pre/post-ReLU + cast
        + tile(D, Dff, cb) + tile(Dff, D, cb)     # FFN weights
        + 2 * tile(1, Dff) + 8 * tile(1, D)       # biases + BN params
    )
    cap = 128 * 1024 * 1024
    try:
        info = pltpu.get_tpu_info()
        cap = int(getattr(info, "vmem_capacity_bytes", cap))
    except Exception:
        pass
    cap = (cap * 7) // 8                          # headroom for compiler scratch
    return int(min(max(2 * est, 16 * 1024 * 1024), cap))


def prepare_layer(params, *, num_heads, compute_dtype=jnp.bfloat16):
    """One-time weight preparation (hoisted out of the per-call path):
    fuse wq/wk/wv into one (D, 3D) weight, fold the 1/sqrt(d_attention) attention
    scale into the Q slice, and cast matmul weights to the compute dtype."""
    d_model = params["wq"].shape[0]
    da = d_model // num_heads
    inv_scale = 1.0 / (float(da) ** 0.5)
    wqkv = jnp.concatenate(
        [params["wq"] * inv_scale, params["wk"], params["wv"]], axis=1)   # (D, 3D)
    bqkv = jnp.concatenate(
        [params["bq"] * inv_scale, params["bk"], params["bv"]], axis=1)   # (1, 3D)
    cast_w = lambda w: w.astype(compute_dtype)   # matmul weights only; biases/BN stay f32
    return {
        "wqkv": cast_w(wqkv), "bqkv": bqkv,
        "gamma1": params["gamma1"], "beta1": params["beta1"],
        "w1": cast_w(params["w1"]), "b1": params["b1"],
        "w2": cast_w(params["w2"]), "b2": params["b2"],
        "gamma2": params["gamma2"], "beta2": params["beta2"],
    }


def encoder_layer_forward(X, fused, *, num_heads, eps=1e-5):
    """X: (num_sensed, seq_len, d_model) float32; `fused` from prepare_layer().

    fused weights in bfloat16 -> fast path: bf16 MXU operands (f32 accumulation)
                                 and EUP approximate softmax reciprocal.
    fused weights in float32  -> reference-exact path.
    """
    num_sensed, seq_len, d_model = X.shape
    d_ff = fused["w1"].shape[1]
    da = d_model // num_heads
    N = num_sensed * seq_len
    x2d = X.reshape(N, d_model)

    compute_dtype = jnp.dtype(fused["wqkv"].dtype)
    approx_recip = compute_dtype == jnp.dtype(jnp.bfloat16)

    args = (
        x2d,
        fused["wqkv"], fused["bqkv"],
        fused["gamma1"], fused["beta1"],
        fused["w1"], fused["b1"],
        fused["w2"], fused["b2"],
        fused["gamma2"], fused["beta2"],
    )

    flops = (2 * N * d_model * 3 * d_model          # fused QKV projection
             + 4 * num_heads * N * N * da           # QK^T and PV
             + 2 * N * d_model * d_ff               # FFN linear 1
             + 2 * N * d_ff * d_model)              # FFN linear 2
    bytes_accessed = (sum(int(np.prod(a.shape)) * a.dtype.itemsize for a in args)
                      + N * d_model * 4)            # + output
    cost = pl.CostEstimate(flops=int(flops),
                           transcendentals=int(num_heads * N * N),
                           bytes_accessed=int(bytes_accessed))

    vmem_spec = pl.BlockSpec(memory_space=pltpu.MemorySpace.VMEM)
    out = pl.pallas_call(
        functools.partial(
            _encoder_layer_kernel,
            num_heads=num_heads, eps=eps,
            compute_dtype=compute_dtype, approx_recip=approx_recip,
        ),
        out_shape=jax.ShapeDtypeStruct((N, d_model), jnp.float32),
        in_specs=[vmem_spec] * len(args),
        out_specs=vmem_spec,
        compiler_params=pltpu.CompilerParams(
            vmem_limit_bytes=_vmem_limit_bytes(
                N, d_model, d_ff, num_heads, compute_dtype.itemsize)),
        cost_estimate=cost,
    )(*args)
    return out.reshape(num_sensed, seq_len, d_model)


def _reference_forward(X, params, *, num_heads, eps=1e-5):
    """Pure-JAX reference mirroring the PyTorch forward (dropout=identity, BN batch stats)."""
    num_sensed, seq_len, d_model = X.shape
    N = num_sensed * seq_len
    da = d_model // num_heads
    x = X.reshape(N, d_model)
    q = x @ params["wq"] + params["bq"]
    k = x @ params["wk"] + params["bk"]
    v = x @ params["wv"] + params["bv"]
    qh = q.reshape(N, num_heads, da).transpose(1, 0, 2)
    kh = k.reshape(N, num_heads, da).transpose(1, 0, 2)
    vh = v.reshape(N, num_heads, da).transpose(1, 0, 2)
    s = jnp.einsum("hnd,hmd->hnm", qh, kh) / (da ** 0.5)
    p = jax.nn.softmax(s, axis=-1)
    ctx = jnp.einsum("hnm,hmd->hnd", p, vh).transpose(1, 0, 2).reshape(N, d_model)
    r1 = x + ctx
    m1 = r1.mean(axis=0, keepdims=True)
    v1 = ((r1 - m1) ** 2).mean(axis=0, keepdims=True)
    n1 = (r1 - m1) / jnp.sqrt(v1 + eps) * params["gamma1"] + params["beta1"]
    h1 = jnp.maximum(n1 @ params["w1"] + params["b1"], 0.0)
    ffn = h1 @ params["w2"] + params["b2"]
    r2 = n1 + ffn
    m2 = r2.mean(axis=0, keepdims=True)
    v2 = ((r2 - m2) ** 2).mean(axis=0, keepdims=True)
    out = (r2 - m2) / jnp.sqrt(v2 + eps) * params["gamma2"] + params["beta2"]
    return out.reshape(num_sensed, seq_len, d_model)


def make_params(key, d_model, d_ff):
    ks = jax.random.split(key, 10)
    s = 0.1
    # Linear weights stored as (in, out) so the kernel computes x @ W + b
    # (equivalent to PyTorch's x @ W.T + b with W of shape (out, in)).
    return {
        "wq": s * jax.random.normal(ks[0], (d_model, d_model), jnp.float32),
        "bq": s * jax.random.normal(ks[1], (1, d_model), jnp.float32),
        "wk": s * jax.random.normal(ks[2], (d_model, d_model), jnp.float32),
        "bk": s * jax.random.normal(ks[3], (1, d_model), jnp.float32),
        "wv": s * jax.random.normal(ks[4], (d_model, d_model), jnp.float32),
        "bv": s * jax.random.normal(ks[5], (1, d_model), jnp.float32),
        "gamma1": jnp.ones((1, d_model), jnp.float32)
        + 0.05 * jax.random.normal(ks[6], (1, d_model), jnp.float32),
        "beta1": 0.05 * jax.random.normal(ks[7], (1, d_model), jnp.float32),
        "w1": s * jax.random.normal(ks[8], (d_model, d_ff), jnp.float32),
        "b1": jnp.zeros((1, d_ff), jnp.float32),
        "w2": s * jax.random.normal(ks[9], (d_ff, d_model), jnp.float32),
        "b2": jnp.zeros((1, d_model), jnp.float32),
        "gamma2": jnp.ones((1, d_model), jnp.float32),
        "beta2": jnp.zeros((1, d_model), jnp.float32),
    }


if __name__ == "__main__":
    num_sensed, seq_len, d_model, num_heads, d_ff = 4, 8, 32, 4, 64

    key = jax.random.PRNGKey(0)
    kx, kp = jax.random.split(key)
    X = jax.random.normal(kx, (num_sensed, seq_len, d_model), jnp.float32)
    params = make_params(kp, d_model, d_ff)

    ref = _reference_forward(X, params, num_heads=num_heads)

    # Default fast path: bf16 MXU operands (f32 accumulation), f32 BN/softmax math,
    # EUP approximate softmax reciprocal.  Fused weights prepared once (hoisted).
    fused_bf16 = prepare_layer(params, num_heads=num_heads)  # bf16 default
    out_bf16 = jax.block_until_ready(
        encoder_layer_forward(X, fused_bf16, num_heads=num_heads))
    np.testing.assert_allclose(np.asarray(out_bf16), np.asarray(ref),
                               rtol=5e-2, atol=5e-2)

    # Reference-exact path (f32 MXU operands, exact softmax reciprocal).
    fused_f32 = prepare_layer(params, num_heads=num_heads, compute_dtype=jnp.float32)
    out_f32 = jax.block_until_ready(
        encoder_layer_forward(X, fused_f32, num_heads=num_heads))
    np.testing.assert_allclose(np.asarray(out_f32), np.asarray(ref),
                               rtol=1e-4, atol=1e-4)

    print("KERNEL_OK")
</pallas_src>

<mosaic_0001>
module attributes {stable_mosaic.version = 11 : i64} {
  func.func @_encoder_layer_kernel(%arg0: memref<32x32xf32, #tpu.memory_space<vmem>>, %arg1: memref<32x96xbf16, #tpu.memory_space<vmem>>, %arg2: memref<1x96xf32, #tpu.memory_space<vmem>>, %arg3: memref<1x32xf32, #tpu.memory_space<vmem>>, %arg4: memref<1x32xf32, #tpu.memory_space<vmem>>, %arg5: memref<32x64xbf16, #tpu.memory_space<vmem>>, %arg6: memref<1x64xf32, #tpu.memory_space<vmem>>, %arg7: memref<64x32xbf16, #tpu.memory_space<vmem>>, %arg8: memref<1x32xf32, #tpu.memory_space<vmem>>, %arg9: memref<1x32xf32, #tpu.memory_space<vmem>>, %arg10: memref<1x32xf32, #tpu.memory_space<vmem>>, %arg11: memref<32x32xf32, #tpu.memory_space<vmem>>) attributes {dimension_semantics = [], scalar_prefetch = 0 : i64, scratch_operands = 0 : i64, tpu.core_type = #tpu.core_type<tc>} {
    %c0 = arith.constant 0 : index
    %c0_0 = arith.constant 0 : index
    %0 = vector.load %arg0[%c0, %c0_0] : memref<32x32xf32, #tpu.memory_space<vmem>>, vector<32x32xf32>
    %1 = arith.truncf %0 : vector<32x32xf32> to vector<32x32xbf16>
    %c0_1 = arith.constant 0 : index
    %c0_2 = arith.constant 0 : index
    %2 = vector.load %arg1[%c0_1, %c0_2] : memref<32x96xbf16, #tpu.memory_space<vmem>>, vector<32x96xbf16>
    %cst = arith.constant dense<0.000000e+00> : vector<32x96xf32>
    %3 = tpu.matmul %1, %2, %cst {dimension_numbers = #tpu.dot_dimension_numbers<[1], [0], [0], [1], [0, 0, 1, 1], [], []>} : vector<32x32xbf16>, vector<32x96xbf16>, vector<32x96xf32> -> vector<32x96xf32>
    %c0_3 = arith.constant 0 : index
    %c0_4 = arith.constant 0 : index
    %4 = vector.load %arg2[%c0_3, %c0_4] : memref<1x96xf32, #tpu.memory_space<vmem>>, vector<1x96xf32>
    %5 = vector.broadcast %4 : vector<1x96xf32> to vector<32x96xf32>
    %6 = arith.addf %3, %5 : vector<32x96xf32>
    %7 = arith.truncf %6 : vector<32x96xf32> to vector<32x96xbf16>
    %8 = vector.extract_strided_slice %7 {offsets = [0, 0], sizes = [32, 8], strides = [1, 1]} : vector<32x96xbf16> to vector<32x8xbf16>
    %9 = vector.extract_strided_slice %7 {offsets = [0, 8], sizes = [32, 8], strides = [1, 1]} : vector<32x96xbf16> to vector<32x8xbf16>
    %10 = vector.extract_strided_slice %7 {offsets = [0, 16], sizes = [32, 8], strides = [1, 1]} : vector<32x96xbf16> to vector<32x8xbf16>
    %11 = vector.extract_strided_slice %7 {offsets = [0, 24], sizes = [32, 8], strides = [1, 1]} : vector<32x96xbf16> to vector<32x8xbf16>
    %12 = vector.shape_cast %8 : vector<32x8xbf16> to vector<1x32x8xbf16>
    %13 = vector.shape_cast %9 : vector<32x8xbf16> to vector<1x32x8xbf16>
    %14 = vector.shape_cast %10 : vector<32x8xbf16> to vector<1x32x8xbf16>
    %15 = vector.shape_cast %11 : vector<32x8xbf16> to vector<1x32x8xbf16>
    %16 = tpu.concatenate %12, %13, %14, %15 in 0 : vector<1x32x8xbf16>, vector<1x32x8xbf16>, vector<1x32x8xbf16>, vector<1x32x8xbf16> -> vector<4x32x8xbf16>
    %17 = vector.extract_strided_slice %7 {offsets = [0, 32], sizes = [32, 8], strides = [1, 1]} : vector<32x96xbf16> to vector<32x8xbf16>
    %18 = vector.extract_strided_slice %7 {offsets = [0, 40], sizes = [32, 8], strides = [1, 1]} : vector<32x96xbf16> to vector<32x8xbf16>
    %19 = vector.extract_strided_slice %7 {offsets = [0, 48], sizes = [32, 8], strides = [1, 1]} : vector<32x96xbf16> to vector<32x8xbf16>
    %20 = vector.extract_strided_slice %7 {offsets = [0, 56], sizes = [32, 8], strides = [1, 1]} : vector<32x96xbf16> to vector<32x8xbf16>
    %21 = vector.shape_cast %17 : vector<32x8xbf16> to vector<1x32x8xbf16>
    %22 = vector.shape_cast %18 : vector<32x8xbf16> to vector<1x32x8xbf16>
    %23 = vector.shape_cast %19 : vector<32x8xbf16> to vector<1x32x8xbf16>
    %24 = vector.shape_cast %20 : vector<32x8xbf16> to vector<1x32x8xbf16>
    %25 = tpu.concatenate %21, %22, %23, %24 in 0 : vector<1x32x8xbf16>, vector<1x32x8xbf16>, vector<1x32x8xbf16>, vector<1x32x8xbf16> -> vector<4x32x8xbf16>
    %26 = vector.extract_strided_slice %7 {offsets = [0, 64], sizes = [32, 8], strides = [1, 1]} : vector<32x96xbf16> to vector<32x8xbf16>
    %27 = vector.extract_strided_slice %7 {offsets = [0, 72], sizes = [32, 8], strides = [1, 1]} : vector<32x96xbf16> to vector<32x8xbf16>
    %28 = vector.extract_strided_slice %7 {offsets = [0, 80], sizes = [32, 8], strides = [1, 1]} : vector<32x96xbf16> to vector<32x8xbf16>
    %29 = vector.extract_strided_slice %7 {offsets = [0, 88], sizes = [32, 8], strides = [1, 1]} : vector<32x96xbf16> to vector<32x8xbf16>
    %30 = vector.shape_cast %26 : vector<32x8xbf16> to vector<1x32x8xbf16>
    %31 = vector.shape_cast %27 : vector<32x8xbf16> to vector<1x32x8xbf16>
    %32 = vector.shape_cast %28 : vector<32x8xbf16> to vector<1x32x8xbf16>
    %33 = vector.shape_cast %29 : vector<32x8xbf16> to vector<1x32x8xbf16>
    %34 = tpu.concatenate %30, %31, %32, %33 in 0 : vector<1x32x8xbf16>, vector<1x32x8xbf16>, vector<1x32x8xbf16>, vector<1x32x8xbf16> -> vector<4x32x8xbf16>
    "tpu.trace_start"() <{level = 10 : i32, message = "hnd,hmd->hnm"}> : () -> ()
    %cst_5 = arith.constant dense<0.000000e+00> : vector<4x32x32xf32>
    %35 = tpu.matmul %16, %25, %cst_5 {dimension_numbers = #tpu.dot_dimension_numbers<[2], [2], [1], [1], [0, 0, 0, 1, 1, 1], [0], [0]>} : vector<4x32x8xbf16>, vector<4x32x8xbf16>, vector<4x32x32xf32> -> vector<4x32x32xf32>
    "tpu.trace_stop"() : () -> ()
    %cst_6 = arith.constant dense<0xFF800000> : vector<4x32xf32>
    %36 = vector.multi_reduction <maximumf>, %35, %cst_6 [2] : vector<4x32x32xf32> to vector<4x32xf32>
    %37 = vector.shape_cast %36 : vector<4x32xf32> to vector<4x32x1xf32>
    %38 = vector.broadcast %37 : vector<4x32x1xf32> to vector<4x32x32xf32>
    %39 = arith.subf %35, %38 : vector<4x32x32xf32>
    %40 = math.exp %39 : vector<4x32x32xf32>
    %cst_7 = arith.constant dense<0.000000e+00> : vector<4x32xf32>
    %41 = vector.multi_reduction <add>, %40, %cst_7 [2] : vector<4x32x32xf32> to vector<4x32xf32>
    %42 = vector.shape_cast %41 : vector<4x32xf32> to vector<4x32x1xf32>
    %43 = tpu.reciprocal %42 {approx = true} : vector<4x32x1xf32> -> vector<4x32x1xf32>
    %44 = vector.broadcast %43 : vector<4x32x1xf32> to vector<4x32x32xf32>
    %45 = arith.mulf %40, %44 : vector<4x32x32xf32>
    %46 = arith.truncf %45 : vector<4x32x32xf32> to vector<4x32x32xbf16>
    "tpu.trace_start"() <{level = 10 : i32, message = "hnm,hmd->hnd"}> : () -> ()
    %cst_8 = arith.constant dense<0.000000e+00> : vector<4x32x8xf32>
    %47 = tpu.matmul %46, %34, %cst_8 {dimension_numbers = #tpu.dot_dimension_numbers<[2], [1], [1], [2], [0, 0, 0, 1, 1, 2], [0], [0]>} : vector<4x32x32xbf16>, vector<4x32x8xbf16>, vector<4x32x8xf32> -> vector<4x32x8xf32>
    "tpu.trace_stop"() : () -> ()
    %48 = vector.extract_strided_slice %47 {offsets = [0, 0, 0], sizes = [1, 32, 8], strides = [1, 1, 1]} : vector<4x32x8xf32> to vector<1x32x8xf32>
    %49 = vector.shape_cast %48 : vector<1x32x8xf32> to vector<32x8xf32>
    %50 = vector.extract_strided_slice %47 {offsets = [1, 0, 0], sizes = [1, 32, 8], strides = [1, 1, 1]} : vector<4x32x8xf32> to vector<1x32x8xf32>
    %51 = vector.shape_cast %50 : vector<1x32x8xf32> to vector<32x8xf32>
    %52 = vector.extract_strided_slice %47 {offsets = [2, 0, 0], sizes = [1, 32, 8], strides = [1, 1, 1]} : vector<4x32x8xf32> to vector<1x32x8xf32>
    %53 = vector.shape_cast %52 : vector<1x32x8xf32> to vector<32x8xf32>
    %54 = vector.extract_strided_slice %47 {offsets = [3, 0, 0], sizes = [1, 32, 8], strides = [1, 1, 1]} : vector<4x32x8xf32> to vector<1x32x8xf32>
    %55 = vector.shape_cast %54 : vector<1x32x8xf32> to vector<32x8xf32>
    %56 = tpu.concatenate %49, %51, %53, %55 in 1 : vector<32x8xf32>, vector<32x8xf32>, vector<32x8xf32>, vector<32x8xf32> -> vector<32x32xf32>
    %57 = arith.addf %0, %56 : vector<32x32xf32>
    %cst_9 = arith.constant dense<0.000000e+00> : vector<32xf32>
    %58 = vector.multi_reduction <add>, %57, %cst_9 [0] : vector<32x32xf32> to vector<32xf32>
    %59 = vector.shape_cast %58 : vector<32xf32> to vector<1x32xf32>
    %cst_10 = arith.constant 3.125000e-02 : f32
    %60 = vector.broadcast %cst_10 : f32 to vector<1x32xf32>
    %61 = arith.mulf %59, %60 : vector<1x32xf32>
    %62 = arith.mulf %57, %57 : vector<32x32xf32>
    %cst_11 = arith.constant dense<0.000000e+00> : vector<32xf32>
    %63 = vector.multi_reduction <add>, %62, %cst_11 [0] : vector<32x32xf32> to vector<32xf32>
    %64 = vector.shape_cast %63 : vector<32xf32> to vector<1x32xf32>
    %cst_12 = arith.constant 3.125000e-02 : f32
    %65 = vector.broadcast %cst_12 : f32 to vector<1x32xf32>
    %66 = arith.mulf %64, %65 : vector<1x32xf32>
    %67 = arith.mulf %61, %61 : vector<1x32xf32>
    %68 = arith.subf %66, %67 : vector<1x32xf32>
    %cst_13 = arith.constant 0.000000e+00 : f32
    %69 = vector.broadcast %cst_13 : f32 to vector<1x32xf32>
    %70 = arith.maximumf %68, %69 : vector<1x32xf32>
    %cst_14 = arith.constant 9.99999974E-6 : f32
    %71 = vector.broadcast %cst_14 : f32 to vector<1x32xf32>
    %72 = arith.addf %70, %71 : vector<1x32xf32>
    %73 = math.rsqrt %72 : vector<1x32xf32>
    %c0_15 = arith.constant 0 : index
    %c0_16 = arith.constant 0 : index
    %74 = vector.load %arg3[%c0_15, %c0_16] : memref<1x32xf32, #tpu.memory_space<vmem>>, vector<1x32xf32>
    %75 = arith.mulf %73, %74 : vector<1x32xf32>
    %76 = vector.broadcast %61 : vector<1x32xf32> to vector<32x32xf32>
    %77 = arith.subf %57, %76 : vector<32x32xf32>
    %78 = vector.broadcast %75 : vector<1x32xf32> to vector<32x32xf32>
    %79 = arith.mulf %77, %78 : vector<32x32xf32>
    %c0_17 = arith.constant 0 : index
    %c0_18 = arith.constant 0 : index
    %80 = vector.load %arg4[%c0_17, %c0_18] : memref<1x32xf32, #tpu.memory_space<vmem>>, vector<1x32xf32>
    %81 = vector.broadcast %80 : vector<1x32xf32> to vector<32x32xf32>
    %82 = arith.addf %79, %81 : vector<32x32xf32>
    %83 = arith.truncf %82 : vector<32x32xf32> to vector<32x32xbf16>
    %c0_19 = arith.constant 0 : index
    %c0_20 = arith.constant 0 : index
    %84 = vector.load %arg5[%c0_19, %c0_20] : memref<32x64xbf16, #tpu.memory_space<vmem>>, vector<32x64xbf16>
    %cst_21 = arith.constant dense<0.000000e+00> : vector<32x64xf32>
    %85 = tpu.matmul %83, %84, %cst_21 {dimension_numbers = #tpu.dot_dimension_numbers<[1], [0], [0], [1], [0, 0, 1, 1], [], []>} : vector<32x32xbf16>, vector<32x64xbf16>, vector<32x64xf32> -> vector<32x64xf32>
    %c0_22 = arith.constant 0 : index
    %c0_23 = arith.constant 0 : index
    %86 = vector.load %arg6[%c0_22, %c0_23] : memref<1x64xf32, #tpu.memory_space<vmem>>, vector<1x64xf32>
    %87 = vector.broadcast %86 : vector<1x64xf32> to vector<32x64xf32>
    %88 = arith.addf %85, %87 : vector<32x64xf32>
    %cst_24 = arith.constant 0.000000e+00 : f32
    %89 = vector.broadcast %cst_24 : f32 to vector<32x64xf32>
    %90 = arith.maximumf %88, %89 : vector<32x64xf32>
    %91 = arith.truncf %90 : vector<32x64xf32> to vector<32x64xbf16>
    %c0_25 = arith.constant 0 : index
    %c0_26 = arith.constant 0 : index
    %92 = vector.load %arg7[%c0_25, %c0_26] : memref<64x32xbf16, #tpu.memory_space<vmem>>, vector<64x32xbf16>
    %cst_27 = arith.constant dense<0.000000e+00> : vector<32x32xf32>
    %93 = tpu.matmul %91, %92, %cst_27 {dimension_numbers = #tpu.dot_dimension_numbers<[1], [0], [0], [1], [0, 0, 1, 1], [], []>} : vector<32x64xbf16>, vector<64x32xbf16>, vector<32x32xf32> -> vector<32x32xf32>
    %c0_28 = arith.constant 0 : index
    %c0_29 = arith.constant 0 : index
    %94 = vector.load %arg8[%c0_28, %c0_29] : memref<1x32xf32, #tpu.memory_space<vmem>>, vector<1x32xf32>
    %95 = vector.broadcast %94 : vector<1x32xf32> to vector<32x32xf32>
    %96 = arith.addf %93, %95 : vector<32x32xf32>
    %97 = arith.addf %82, %96 : vector<32x32xf32>
    %cst_30 = arith.constant dense<0.000000e+00> : vector<32xf32>
    %98 = vector.multi_reduction <add>, %97, %cst_30 [0] : vector<32x32xf32> to vector<32xf32>
    %99 = vector.shape_cast %98 : vector<32xf32> to vector<1x32xf32>
    %cst_31 = arith.constant 3.125000e-02 : f32
    %100 = vector.broadcast %cst_31 : f32 to vector<1x32xf32>
    %101 = arith.mulf %99, %100 : vector<1x32xf32>
    %102 = arith.mulf %97, %97 : vector<32x32xf32>
    %cst_32 = arith.constant dense<0.000000e+00> : vector<32xf32>
    %103 = vector.multi_reduction <add>, %102, %cst_32 [0] : vector<32x32xf32> to vector<32xf32>
    %104 = vector.shape_cast %103 : vector<32xf32> to vector<1x32xf32>
    %cst_33 = arith.constant 3.125000e-02 : f32
    %105 = vector.broadcast %cst_33 : f32 to vector<1x32xf32>
    %106 = arith.mulf %104, %105 : vector<1x32xf32>
    %107 = arith.mulf %101, %101 : vector<1x32xf32>
    %108 = arith.subf %106, %107 : vector<1x32xf32>
    %cst_34 = arith.constant 0.000000e+00 : f32
    %109 = vector.broadcast %cst_34 : f32 to vector<1x32xf32>
    %110 = arith.maximumf %108, %109 : vector<1x32xf32>
    %cst_35 = arith.constant 9.99999974E-6 : f32
    %111 = vector.broadcast %cst_35 : f32 to vector<1x32xf32>
    %112 = arith.addf %110, %111 : vector<1x32xf32>
    %113 = math.rsqrt %112 : vector<1x32xf32>
    %c0_36 = arith.constant 0 : index
    %c0_37 = arith.constant 0 : index
    %114 = vector.load %arg9[%c0_36, %c0_37] : memref<1x32xf32, #tpu.memory_space<vmem>>, vector<1x32xf32>
    %115 = arith.mulf %113, %114 : vector<1x32xf32>
    %116 = vector.broadcast %101 : vector<1x32xf32> to vector<32x32xf32>
    %117 = arith.subf %97, %116 : vector<32x32xf32>
    %118 = vector.broadcast %115 : vector<1x32xf32> to vector<32x32xf32>
    %119 = arith.mulf %117, %118 : vector<32x32xf32>
    %c0_38 = arith.constant 0 : index
    %c0_39 = arith.constant 0 : index
    %120 = vector.load %arg10[%c0_38, %c0_39] : memref<1x32xf32, #tpu.memory_space<vmem>>, vector<1x32xf32>
    %121 = vector.broadcast %120 : vector<1x32xf32> to vector<32x32xf32>
    %122 = arith.addf %119, %121 : vector<32x32xf32>
    %c0_40 = arith.constant 0 : index
    %c0_41 = arith.constant 0 : index
    %123 = vector.load %arg11[%c0_40, %c0_41] : memref<32x32xf32, #tpu.memory_space<vmem>>, vector<32x32xf32>
    tpu.vector_store %arg11[%c0_40, %c0_41], %122 {strides = array<i32>} : memref<32x32xf32, #tpu.memory_space<vmem>>, vector<32x32xf32>,
    return
  }
}

</mosaic_0001>

<llo_original>
// kernel: tpu_custom_call.1
$region0: #{tpu_custom_call.1}
  #allocation0 [shape = 'u32[]', space=smem, size = 0x4, offset = 0x4, fixed_abs, tag = 'smem constant byte address 0x4 - core index']
  #allocation1 [shape = 'u32[72,128]{1,0:T(1,128)}', space=vmem, size = 0x9000, scoped, tag = 'internal scratch']
  %s0 = inlined_call_operand.vmem [shape: f32[32,32], index: 0, kind: input, shape index: {}]
  %s1 = inlined_call_operand.vmem [shape: bf16[32,96], index: 1, kind: input, shape index: {}]
  %s2 = inlined_call_operand.vmem [shape: f32[1,96], index: 2, kind: input, shape index: {}]
  %s3 = inlined_call_operand.vmem [shape: f32[1,32], index: 3, kind: input, shape index: {}]
  %s4 = inlined_call_operand.vmem [shape: f32[1,32], index: 4, kind: input, shape index: {}]
  %s5 = inlined_call_operand.hbm [shape: bf16[32,64], index: 5, kind: input, shape index: {}]
  %s6 = inlined_call_operand.vmem [shape: f32[1,64], index: 6, kind: input, shape index: {}]
  %s7 = inlined_call_operand.vmem [shape: bf16[64,32], index: 7, kind: input, shape index: {}]
  %s8 = inlined_call_operand.vmem [shape: f32[1,32], index: 8, kind: input, shape index: {}]
  %s9 = inlined_call_operand.vmem [shape: f32[1,32], index: 9, kind: input, shape index: {}]
  %s10 = inlined_call_operand.vmem [shape: f32[1,32], index: 10, kind: input, shape index: {}]
  %s11 = inlined_call_operand.hbm [shape: f32[32,32], index: 11, kind: output, shape index: {}]
  %s12 = sld [smem:[#allocation0]]
  $region58: #{tpu_custom_call.1} parent=0
    _
  %s14 = ssub.s32 1, %s12
  %s15 = scalar_select 0, %s14, %s12
  $region1: #{tpu_custom_call.1} parent=0
    #allocation2 [shape = 'u8[8192]{0}', space=vmem, size = 0x2000, scoped, tag = 'input window, operand 5, single buffered']
    #allocation3 [shape = 's32[1]{0}', space=sflag, size = 0x4, scoped, tag = 'scoped memory for tpu_custom_call.1']
    #allocation4 [shape = 's32[1]{0}', space=sflag, size = 0x4, scoped, tag = 'scoped memory for tpu_custom_call.1']
    #allocation5 [shape = 'u8[16384]{0}', space=vmem, size = 0x4000, scoped, tag = 'output window, operand 0, single buffered']
    %16 = vsyncpa [#allocation3], 0
    %17 = vsyncpa [#allocation4], 0
    // Predicated region
    $region2: #{tpu_custom_call.1} parent=1 // pred_check
      _
    $region3: #{tpu_custom_call.1} parent=1 // pred_check_branch
      %19 = sbr.rel (0) target = $region5
    $region4: #{tpu_custom_call.1} parent=1 // pred_region
      _
    $region5: #{tpu_custom_call.1} parent=1 // pred_fallthru
      _
    // Predicated region
    $region6: #{tpu_custom_call.1} parent=1 // pred_check
      _
    $region7: #{tpu_custom_call.1} parent=1 // pred_check_branch
      %21 = sbr.rel (0) target = $region9
    $region8: #{tpu_custom_call.1} parent=1 // pred_region
      _
    $region9: #{tpu_custom_call.1} parent=1 // pred_fallthru
      _
    // Predicated region
    $region10: #{tpu_custom_call.1} parent=1 // pred_check
      _
    $region11: #{tpu_custom_call.1} parent=1 // pred_check_branch
      %23 = sbr.rel (0) target = $region13
    $region12: #{tpu_custom_call.1} parent=1 // pred_region
      _
    $region13: #{tpu_custom_call.1} parent=1 // pred_fallthru
      _
    // Predicated region
    $region14: #{tpu_custom_call.1} parent=1 // pred_check
      _
    $region15: #{tpu_custom_call.1} parent=1 // pred_check_branch
      %25 = sbr.rel (0) target = $region17
    $region16: #{tpu_custom_call.1} parent=1 // pred_region
      _
    $region17: #{tpu_custom_call.1} parent=1 // pred_fallthru
      _
    // Predicated region
    $region18: #{tpu_custom_call.1} parent=1 // pred_check
      _
    $region19: #{tpu_custom_call.1} parent=1 // pred_check_branch
      %27 = sbr.rel (0) target = $region21
    $region20: #{tpu_custom_call.1} parent=1 // pred_region
      _
    $region21: #{tpu_custom_call.1} parent=1 // pred_fallthru
      _
    // Predicated region
    $region22: #{tpu_custom_call.1} parent=1 // pred_check
      _
    $region23: #{tpu_custom_call.1} parent=1 // pred_check_branch
      %29 = sbr.rel (0) target = $region25
    $region24: #{tpu_custom_call.1} parent=1 // pred_region
      %31 = vsyncadd [#allocation3], 0
      %s32 = sshll.u32 %s5, 4
      %s33 = int_to_ptr.hbm [resolvable:$true] %s32
      %s34 = sshll.u32 [#allocation2], 4
      %s35 = int_to_ptr.vmem [resolvable:$true] %s34
      %40 = dma.hbm_to_vmem [thread:$0]  %s33, 256, %s35, [#allocation3], 64, 64, 4
    $region25: #{tpu_custom_call.1} parent=1 // pred_fallthru
      _
    // Predicated region
    $region26: #{tpu_custom_call.1} parent=1 // pred_check
      _
    $region27: #{tpu_custom_call.1} parent=1 // pred_check_branch
      %42 = sbr.rel (0) target = $region29
    $region28: #{tpu_custom_call.1} parent=1 // pred_region
      _
    $region29: #{tpu_custom_call.1} parent=1 // pred_fallthru
      _
    // Predicated region
    $region30: #{tpu_custom_call.1} parent=1 // pred_check
      _
    $region31: #{tpu_custom_call.1} parent=1 // pred_check_branch
      %44 = sbr.rel (0) target = $region33
    $region32: #{tpu_custom_call.1} parent=1 // pred_region
      _
    $region33: #{tpu_custom_call.1} parent=1 // pred_fallthru
      _
    // Predicated region
    $region34: #{tpu_custom_call.1} parent=1 // pred_check
      _
    $region35: #{tpu_custom_call.1} parent=1 // pred_check_branch
      %46 = sbr.rel (0) target = $region37
    $region36: #{tpu_custom_call.1} parent=1 // pred_region
      _
    $region37: #{tpu_custom_call.1} parent=1 // pred_fallthru
      _
    // Predicated region
    $region38: #{tpu_custom_call.1} parent=1 // pred_check
      _
    $region39: #{tpu_custom_call.1} parent=1 // pred_check_branch
      %48 = sbr.rel (0) target = $region41
    $region40: #{tpu_custom_call.1} parent=1 // pred_region
      _
    $region41: #{tpu_custom_call.1} parent=1 // pred_fallthru
      _
    // Predicated region
    $region42: #{tpu_custom_call.1} parent=1 // pred_check
      _
    $region43: #{tpu_custom_call.1} parent=1 // pred_check_branch
      %50 = sbr.rel (0) target = $region45
    $region44: #{tpu_custom_call.1} parent=1 // pred_region
      _
    $region45: #{tpu_custom_call.1} parent=1 // pred_fallthru
      _
    // Predicated region
    $region46: #{tpu_custom_call.1} parent=1 // pred_check
      _
    $region47: #{tpu_custom_call.1} parent=1 // pred_check_branch
      %52 = sbr.rel (0) target = $region49
    $region48: #{tpu_custom_call.1} parent=1 // pred_region
      %54 = dma.done [#allocation3], 256
    $region49: #{tpu_custom_call.1} parent=1 // pred_fallthru
      _
    %v56 = vld [vmem:[%s0] sm:$0xff]
    %v57 = vld [vmem:[%s0 + $0x8] sm:$0xff]
    %v58 = vld [vmem:[%s0 + $0x10] sm:$0xff]
    %v59 = vld [vmem:[%s0 + $0x18] sm:$0xff]
    %v60 = vpack.c.bf16 %v57, %v56
    %v61 = vpack.c.bf16 %v59, %v58
    %v62 = vld [vmem:[%s1] sm:$0xf]
    %v63 = vld [vmem:[%s1 + $0x4] sm:$0xf]
    %v64 = vld [vmem:[%s1 + $0x8] sm:$0xf]
    %v65 = vld [vmem:[%s1 + $0xc] sm:$0xf]
    %v66 = vld [vmem:[%s2] sm:$0x1]
    %v68 = vperm.slane %v66, 0
    %v74 = vunpack.c.l.b16 %v62
    %v75 = vunpack.c.l.b16 %v63
    %v76 = vunpack.c.l.b16 %v64
    %v77 = vunpack.c.l.b16 %v65
    %v78 = vpack.c.b16 %v75, %v74
    %v79 = vpack.c.b16 %v77, %v76
    %vm82 = vcmask 261120
    %v84 = vsel %vm82, %v60, 0
    %v87 = vsel %vm82, %v61, 0
    %89 = vmatpush.bf16.msra.mxu0 0
    %90 = vmatpush.bf16.msra.mxu0 0
    %91 = vmatpush.bf16.msra.mxu0 0
    %92 = vmatpush.bf16.msra.mxu0 0
    %93 = vmatpush.bf16.msra.mxu0 0
    %94 = vmatpush.bf16.msra.mxu0 0
    %95 = vmatpush.bf16.msra.mxu0 %v79
    %96 = vmatpush.bf16.msra.mxu0 %v78
    %97 = vmatmul.bf16.gmra.mxu0 %v84
    %v98 = vpop.f32.mrf.mxu0
    %v99 = vadd.f32 %v68, %v98
    %v100 = vpop.f32.mrf.mxu0
    %v101 = vadd.f32 %v68, %v100
    %102 = vmatmul.bf16.gmra.mxu0 %v87
    %v103 = vpop.f32.mrf.mxu0
    %v104 = vadd.f32 %v68, %v103
    %v105 = vpop.f32.mrf.mxu0
    %v106 = vadd.f32 %v68, %v105
    %107 = vdwg.mxu0
    %v108 = vpack.c.bf16 %v99, %v99
    %v109 = vpack.c.bf16 %v101, %v101
    %v110 = vpack.c.bf16 %v104, %v104
    %v111 = vpack.c.bf16 %v106, %v106
    %116 = vrot.lane.b32.xlu0 %v108, 120
    %v117 = vpop.permute.xlu0 %116
    %118 = vrot.lane.b32.xlu0 %v109, 120
    %v119 = vpop.permute.xlu0 %118
    %120 = vrot.lane.b32.xlu0 %v110, 120
    %v121 = vpop.permute.xlu0 %120
    %122 = vrot.lane.b32.xlu0 %v111, 120
    %v123 = vpop.permute.xlu0 %122
    %124 = vrot.lane.b32.xlu0 %v108, 112
    %v125 = vpop.permute.xlu0 %124
    %126 = vrot.lane.b32.xlu0 %v109, 112
    %v127 = vpop.permute.xlu0 %126
    %128 = vrot.lane.b32.xlu0 %v110, 112
    %v129 = vpop.permute.xlu0 %128
    %130 = vrot.lane.b32.xlu0 %v111, 112
    %v131 = vpop.permute.xlu0 %130
    %132 = vrot.lane.b32.xlu0 %v108, 104
    %v133 = vpop.permute.xlu0 %132
    %134 = vrot.lane.b32.xlu0 %v109, 104
    %v135 = vpop.permute.xlu0 %134
    %136 = vrot.lane.b32.xlu0 %v110, 104
    %v137 = vpop.permute.xlu0 %136
    %138 = vrot.lane.b32.xlu0 %v111, 104
    %v139 = vpop.permute.xlu0 %138
    %v140 = vunpack.c.l.b16 %v108
    %v141 = vunpack.c.l.b16 %v109
    %v142 = vunpack.c.l.b16 %v110
    %v143 = vunpack.c.l.b16 %v111
    %v144 = vpack.c.b16 %v141, %v140
    %v145 = vpack.c.b16 %v143, %v142
    %146 = vrot.lane.b32.xlu0 %v144, 96
    %v147 = vpop.permute.xlu0 %146
    %148 = vrot.lane.b32.xlu0 %v145, 96
    %v149 = vpop.permute.xlu0 %148
    %vm150 = vcmask 64512
    %v152 = vsel %vm150, %v144, 0
    %v155 = vsel %vm150, %v145, 0
    %v158 = vsel %vm150, %v147, 0
    %v161 = vsel %vm150, %v149, 0
    %163 = vmatpush.bf16.xpose.msra.mxu0 0
    %164 = vmatpush.bf16.xpose.msra.mxu0 0
    %165 = vmatpush.bf16.xpose.msra.mxu0 0
    %166 = vmatpush.bf16.xpose.msra.mxu0 0
    %167 = vmatpush.bf16.xpose.msra.mxu0 0
    %168 = vmatpush.bf16.xpose.msra.mxu0 0
    %169 = vmatpush.bf16.xpose.msra.mxu0 %v161
    %170 = vmatpush.bf16.xpose.msra.mxu0 %v158
    %171 = vmatmul.bf16.gmra.mxu0 %v152
    %v172 = vpop.f32.mrf.mxu0
    %v173 = vadd.f32 0.0, %v172
    %v174 = vpop.f32.mrf.mxu0
    %v175 = vadd.f32 0.0, %v174
    %176 = vmatmul.bf16.gmra.mxu0 %v155
    %v177 = vpop.f32.mrf.mxu0
    %v178 = vadd.f32 0.0, %v177
    %v179 = vpop.f32.mrf.mxu0
    %v180 = vadd.f32 0.0, %v179
    %181 = vdwg.mxu0
    %v182 = vunpack.c.l.b16 %v117
    %v183 = vunpack.c.l.b16 %v119
    %v184 = vunpack.c.l.b16 %v121
    %v185 = vunpack.c.l.b16 %v123
    %v186 = vpack.c.b16 %v183, %v182
    %v187 = vpack.c.b16 %v185, %v184
    %188 = vrot.lane.b32.xlu0 %v186, 96
    %v189 = vpop.permute.xlu0 %188
    %190 = vrot.lane.b32.xlu0 %v187, 96
    %v191 = vpop.permute.xlu0 %190
    %v193 = vsel %vm150, %v186, 0
    %v196 = vsel %vm150, %v187, 0
    %v199 = vsel %vm150, %v189, 0
    %v202 = vsel %vm150, %v191, 0
    %204 = vmatpush.bf16.xpose.msra.mxu0 0
    %205 = vmatpush.bf16.xpose.msra.mxu0 0
    %206 = vmatpush.bf16.xpose.msra.mxu0 0
    %207 = vmatpush.bf16.xpose.msra.mxu0 0
    %208 = vmatpush.bf16.xpose.msra.mxu0 0
    %209 = vmatpush.bf16.xpose.msra.mxu0 0
    %210 = vmatpush.bf16.xpose.msra.mxu0 %v202
    %211 = vmatpush.bf16.xpose.msra.mxu0 %v199
    %212 = vmatmul.bf16.gmra.mxu0 %v193
    %v213 = vpop.f32.mrf.mxu0
    %v214 = vadd.f32 0.0, %v213
    %v215 = vpop.f32.mrf.mxu0
    %v216 = vadd.f32 0.0, %v215
    %217 = vmatmul.bf16.gmra.mxu0 %v196
    %v218 = vpop.f32.mrf.mxu0
    %v219 = vadd.f32 0.0, %v218
    %v220 = vpop.f32.mrf.mxu0
    %v221 = vadd.f32 0.0, %v220
    %222 = vdwg.mxu0
    %v223 = vunpack.c.l.b16 %v125
    %v224 = vunpack.c.l.b16 %v127
    %v225 = vunpack.c.l.b16 %v129
    %v226 = vunpack.c.l.b16 %v131
    %v227 = vpack.c.b16 %v224, %v223
    %v228 = vpack.c.b16 %v226, %v225
    %229 = vrot.lane.b32.xlu0 %v227, 96
    %v230 = vpop.permute.xlu0 %229
    %231 = vrot.lane.b32.xlu0 %v228, 96
    %v232 = vpop.permute.xlu0 %231
    %v234 = vsel %vm150, %v227, 0
    %v237 = vsel %vm150, %v228, 0
    %v240 = vsel %vm150, %v230, 0
    %v243 = vsel %vm150, %v232, 0
    %245 = vmatpush.bf16.xpose.msra.mxu0 0
    %246 = vmatpush.bf16.xpose.msra.mxu0 0
    %247 = vmatpush.bf16.xpose.msra.mxu0 0
    %248 = vmatpush.bf16.xpose.msra.mxu0 0
    %249 = vmatpush.bf16.xpose.msra.mxu0 0
    %250 = vmatpush.bf16.xpose.msra.mxu0 0
    %251 = vmatpush.bf16.xpose.msra.mxu0 %v243
    %252 = vmatpush.bf16.xpose.msra.mxu0 %v240
    %253 = vmatmul.bf16.gmra.mxu0 %v234
    %v254 = vpop.f32.mrf.mxu0
    %v255 = vadd.f32 0.0, %v254
    %v256 = vpop.f32.mrf.mxu0
    %v257 = vadd.f32 0.0, %v256
    %258 = vmatmul.bf16.gmra.mxu0 %v237
    %v259 = vpop.f32.mrf.mxu0
    %v260 = vadd.f32 0.0, %v259
    %v261 = vpop.f32.mrf.mxu0
    %v262 = vadd.f32 0.0, %v261
    %263 = vdwg.mxu0
    %v264 = vunpack.c.l.b16 %v133
    %v265 = vunpack.c.l.b16 %v135
    %v266 = vunpack.c.l.b16 %v137
    %v267 = vunpack.c.l.b16 %v139
    %v268 = vpack.c.b16 %v265, %v264
    %v269 = vpack.c.b16 %v267, %v266
    %270 = vrot.lane.b32.xlu0 %v268, 96
    %v271 = vpop.permute.xlu0 %270
    %272 = vrot.lane.b32.xlu0 %v269, 96
    %v273 = vpop.permute.xlu0 %272
    %v275 = vsel %vm150, %v268, 0
    %v278 = vsel %vm150, %v269, 0
    %v281 = vsel %vm150, %v271, 0
    %v284 = vsel %vm150, %v273, 0
    %286 = vmatpush.bf16.xpose.msra.mxu0 0
    %287 = vmatpush.bf16.xpose.msra.mxu0 0
    %288 = vmatpush.bf16.xpose.msra.mxu0 0
    %289 = vmatpush.bf16.xpose.msra.mxu0 0
    %290 = vmatpush.bf16.xpose.msra.mxu0 0
    %291 = vmatpush.bf16.xpose.msra.mxu0 0
    %292 = vmatpush.bf16.xpose.msra.mxu0 %v284
    %293 = vmatpush.bf16.xpose.msra.mxu0 %v281
    %294 = vmatmul.bf16.gmra.mxu0 %v275
    %v295 = vpop.f32.mrf.mxu0
    %v296 = vadd.f32 0.0, %v295
    %v297 = vpop.f32.mrf.mxu0
    %v298 = vadd.f32 0.0, %v297
    %299 = vmatmul.bf16.gmra.mxu0 %v278
    %v300 = vpop.f32.mrf.mxu0
    %v301 = vadd.f32 0.0, %v300
    %v302 = vpop.f32.mrf.mxu0
    %v303 = vadd.f32 0.0, %v302
    %304 = vdwg.mxu0
    %v305 = vsel %vm82, %v173, -inf
    %306 = vmax.xlane.f32.xlu0 %v305
    %v307 = vpop.xlane.xlu0 %306
    %v308 = vsel %vm82, %v175, -inf
    %309 = vmax.xlane.f32.xlu0 %v308
    %v310 = vpop.xlane.xlu0 %309
    %v311 = vsel %vm82, %v178, -inf
    %312 = vmax.xlane.f32.xlu0 %v311
    %v313 = vpop.xlane.xlu0 %312
    %v314 = vsel %vm82, %v180, -inf
    %315 = vmax.xlane.f32.xlu0 %v314
    %v316 = vpop.xlane.xlu0 %315
    %v317 = vsel %vm82, %v214, -inf
    %318 = vmax.xlane.f32.xlu0 %v317
    %v319 = vpop.xlane.xlu0 %318
    %v320 = vsel %vm82, %v216, -inf
    %321 = vmax.xlane.f32.xlu0 %v320
    %v322 = vpop.xlane.xlu0 %321
    %v323 = vsel %vm82, %v219, -inf
    %324 = vmax.xlane.f32.xlu0 %v323
    %v325 = vpop.xlane.xlu0 %324
    %v326 = vsel %vm82, %v221, -inf
    %327 = vmax.xlane.f32.xlu0 %v326
    %v328 = vpop.xlane.xlu0 %327
    %v329 = vsel %vm82, %v255, -inf
    %330 = vmax.xlane.f32.xlu0 %v329
    %v331 = vpop.xlane.xlu0 %330
    %v332 = vsel %vm82, %v257, -inf
    %333 = vmax.xlane.f32.xlu0 %v332
    %v334 = vpop.xlane.xlu0 %333
    %v335 = vsel %vm82, %v260, -inf
    %336 = vmax.xlane.f32.xlu0 %v335
    %v337 = vpop.xlane.xlu0 %336
    %v338 = vsel %vm82, %v262, -inf
    %339 = vmax.xlane.f32.xlu0 %v338
    %v340 = vpop.xlane.xlu0 %339
    %v341 = vsel %vm82, %v296, -inf
    %342 = vmax.xlane.f32.xlu0 %v341
    %v343 = vpop.xlane.xlu0 %342
    %v344 = vsel %vm82, %v298, -inf
    %345 = vmax.xlane.f32.xlu0 %v344
    %v346 = vpop.xlane.xlu0 %345
    %v347 = vsel %vm82, %v301, -inf
    %348 = vmax.xlane.f32.xlu0 %v347
    %v349 = vpop.xlane.xlu0 %348
    %v350 = vsel %vm82, %v303, -inf
    %351 = vmax.xlane.f32.xlu0 %v350
    %v352 = vpop.xlane.xlu0 %351
    %v353 = vsub.f32 %v173, %v307
    %v354 = vsub.f32 %v175, %v310
    %v355 = vsub.f32 %v178, %v313
    %v356 = vsub.f32 %v180, %v316
    %v357 = vsub.f32 %v214, %v319
    %v358 = vsub.f32 %v216, %v322
    %v359 = vsub.f32 %v219, %v325
    %v360 = vsub.f32 %v221, %v328
    %v361 = vsub.f32 %v255, %v331
    %v362 = vsub.f32 %v257, %v334
    %v363 = vsub.f32 %v260, %v337
    %v364 = vsub.f32 %v262, %v340
    %v365 = vsub.f32 %v296, %v343
    %v366 = vsub.f32 %v298, %v346
    %v367 = vsub.f32 %v301, %v349
    %v368 = vsub.f32 %v303, %v352
    %v369 = vmul.f32 %v353, 1.442695
    %v370 = vpow.pop %v369
    %v371 = vmul.f32 %v354, 1.442695
    %v372 = vpow.pop %v371
    %v373 = vmul.f32 %v355, 1.442695
    %v374 = vpow.pop %v373
    %v375 = vmul.f32 %v356, 1.442695
    %v376 = vpow.pop %v375
    %v377 = vmul.f32 %v357, 1.442695
    %v378 = vpow.pop %v377
    %v379 = vmul.f32 %v358, 1.442695
    %v380 = vpow.pop %v379
    %v381 = vmul.f32 %v359, 1.442695
    %v382 = vpow.pop %v381
    %v383 = vmul.f32 %v360, 1.442695
    %v384 = vpow.pop %v383
    %v385 = vmul.f32 %v361, 1.442695
    %v386 = vpow.pop %v385
    %v387 = vmul.f32 %v362, 1.442695
    %v388 = vpow.pop %v387
    %v389 = vmul.f32 %v363, 1.442695
    %v390 = vpow.pop %v389
    %v391 = vmul.f32 %v364, 1.442695
    %v392 = vpow.pop %v391
    %v393 = vmul.f32 %v365, 1.442695
    %v394 = vpow.pop %v393
    %v395 = vmul.f32 %v366, 1.442695
    %v396 = vpow.pop %v395
    %v397 = vmul.f32 %v367, 1.442695
    %v398 = vpow.pop %v397
    %v399 = vmul.f32 %v368, 1.442695
    %v400 = vpow.pop %v399
    %v401 = vsel %vm82, %v370, 0.0
    %402 = vadd.xlane.f32.xlu0 %v401
    %v403 = vpop.xlane.xlu0 %402
    %v404 = vsel %vm82, %v372, 0.0
    %405 = vadd.xlane.f32.xlu0 %v404
    %v406 = vpop.xlane.xlu0 %405
    %v407 = vsel %vm82, %v374, 0.0
    %408 = vadd.xlane.f32.xlu0 %v407
    %v409 = vpop.xlane.xlu0 %408
    %v410 = vsel %vm82, %v376, 0.0
    %411 = vadd.xlane.f32.xlu0 %v410
    %v412 = vpop.xlane.xlu0 %411
    %v413 = vsel %vm82, %v378, 0.0
    %414 = vadd.xlane.f32.xlu0 %v413
    %v415 = vpop.xlane.xlu0 %414
    %v416 = vsel %vm82, %v380, 0.0
    %417 = vadd.xlane.f32.xlu0 %v416
    %v418 = vpop.xlane.xlu0 %417
    %v419 = vsel %vm82, %v382, 0.0
    %420 = vadd.xlane.f32.xlu0 %v419
    %v421 = vpop.xlane.xlu0 %420
    %v422 = vsel %vm82, %v384, 0.0
    %423 = vadd.xlane.f32.xlu0 %v422
    %v424 = vpop.xlane.xlu0 %423
    %v425 = vsel %vm82, %v386, 0.0
    %426 = vadd.xlane.f32.xlu0 %v425
    %v427 = vpop.xlane.xlu0 %426
    %v428 = vsel %vm82, %v388, 0.0
    %429 = vadd.xlane.f32.xlu0 %v428
    %v430 = vpop.xlane.xlu0 %429
    %v431 = vsel %vm82, %v390, 0.0
    %432 = vadd.xlane.f32.xlu0 %v431
    %v433 = vpop.xlane.xlu0 %432
    %v434 = vsel %vm82, %v392, 0.0
    %435 = vadd.xlane.f32.xlu0 %v434
    %v436 = vpop.xlane.xlu0 %435
    %v437 = vsel %vm82, %v394, 0.0
    %438 = vadd.xlane.f32.xlu0 %v437
    %v439 = vpop.xlane.xlu0 %438
    %v440 = vsel %vm82, %v396, 0.0
    %441 = vadd.xlane.f32.xlu0 %v440
    %v442 = vpop.xlane.xlu0 %441
    %v443 = vsel %vm82, %v398, 0.0
    %444 = vadd.xlane.f32.xlu0 %v443
    %v445 = vpop.xlane.xlu0 %444
    %v446 = vsel %vm82, %v400, 0.0
    %447 = vadd.xlane.f32.xlu0 %v446
    %v448 = vpop.xlane.xlu0 %447
    %v449 = vrcp.pop %v403
    %v450 = vrcp.pop %v406
    %v451 = vrcp.pop %v409
    %v452 = vrcp.pop %v412
    %v453 = vrcp.pop %v415
    %v454 = vrcp.pop %v418
    %v455 = vrcp.pop %v421
    %v456 = vrcp.pop %v424
    %v457 = vrcp.pop %v427
    %v458 = vrcp.pop %v430
    %v459 = vrcp.pop %v433
    %v460 = vrcp.pop %v436
    %v461 = vrcp.pop %v439
    %v462 = vrcp.pop %v442
    %v463 = vrcp.pop %v445
    %v464 = vrcp.pop %v448
    %v465 = vmul.f32 %v370, %v449
    %v466 = vmul.f32 %v372, %v450
    %v467 = vmul.f32 %v374, %v451
    %v468 = vmul.f32 %v376, %v452
    %v469 = vmul.f32 %v378, %v453
    %v470 = vmul.f32 %v380, %v454
    %v471 = vmul.f32 %v382, %v455
    %v472 = vmul.f32 %v384, %v456
    %v473 = vmul.f32 %v386, %v457
    %v474 = vmul.f32 %v388, %v458
    %v475 = vmul.f32 %v390, %v459
    %v476 = vmul.f32 %v392, %v460
    %v477 = vmul.f32 %v394, %v461
    %v478 = vmul.f32 %v396, %v462
    %v479 = vmul.f32 %v398, %v463
    %v480 = vmul.f32 %v400, %v464
    %v481 = vpack.c.bf16 %v465, %v465
    %v482 = vpack.c.bf16 %v466, %v466
    %v483 = vpack.c.bf16 %v467, %v467
    %v484 = vpack.c.bf16 %v468, %v468
    %v485 = vpack.c.bf16 %v469, %v469
    %v486 = vpack.c.bf16 %v470, %v470
    %v487 = vpack.c.bf16 %v471, %v471
    %v488 = vpack.c.bf16 %v472, %v472
    %v489 = vpack.c.bf16 %v473, %v473
    %v490 = vpack.c.bf16 %v474, %v474
    %v491 = vpack.c.bf16 %v475, %v475
    %v492 = vpack.c.bf16 %v476, %v476
    %v493 = vpack.c.bf16 %v477, %v477
    %v494 = vpack.c.bf16 %v478, %v478
    %v495 = vpack.c.bf16 %v479, %v479
    %v496 = vpack.c.bf16 %v480, %v480
    %v501 = vunpack.c.l.b16 %v481
    %v502 = vunpack.c.l.b16 %v482
    %v503 = vunpack.c.l.b16 %v483
    %v504 = vunpack.c.l.b16 %v484
    %v505 = vpack.c.b16 %v502, %v501
    %v506 = vpack.c.b16 %v504, %v503
    %507 = vrot.lane.b32.xlu0 %v144, 64
    %v508 = vpop.permute.xlu0 %507
    %509 = vrot.lane.b32.xlu0 %v145, 64
    %v510 = vpop.permute.xlu0 %509
    %v514 = vsel %vm82, %v505, 0
    %v517 = vsel %vm82, %v506, 0
    %519 = vmatpush.bf16.msra.mxu0 0
    %520 = vmatpush.bf16.msra.mxu0 0
    %521 = vmatpush.bf16.msra.mxu0 0
    %522 = vmatpush.bf16.msra.mxu0 0
    %523 = vmatpush.bf16.msra.mxu0 0
    %524 = vmatpush.bf16.msra.mxu0 0
    %525 = vmatpush.bf16.msra.mxu0 %v510
    %526 = vmatpush.bf16.msra.mxu0 %v508
    %527 = vmatmul.bf16.gmra.mxu0 %v514
    %v528 = vpop.f32.mrf.mxu0
    %v529 = vadd.f32 0.0, %v528
    %v530 = vpop.f32.mrf.mxu0
    %v531 = vadd.f32 0.0, %v530
    %532 = vmatmul.bf16.gmra.mxu0 %v517
    %v533 = vpop.f32.mrf.mxu0
    %v534 = vadd.f32 0.0, %v533
    %v535 = vpop.f32.mrf.mxu0
    %v536 = vadd.f32 0.0, %v535
    %537 = vdwg.mxu0
    %v542 = vunpack.c.l.b16 %v485
    %v543 = vunpack.c.l.b16 %v486
    %v544 = vunpack.c.l.b16 %v487
    %v545 = vunpack.c.l.b16 %v488
    %v546 = vpack.c.b16 %v543, %v542
    %v547 = vpack.c.b16 %v545, %v544
    %548 = vrot.lane.b32.xlu0 %v186, 64
    %v549 = vpop.permute.xlu0 %548
    %550 = vrot.lane.b32.xlu0 %v187, 64
    %v551 = vpop.permute.xlu0 %550
    %v555 = vsel %vm82, %v546, 0
    %v558 = vsel %vm82, %v547, 0
    %560 = vmatpush.bf16.msra.mxu0 0
    %561 = vmatpush.bf16.msra.mxu0 0
    %562 = vmatpush.bf16.msra.mxu0 0
    %563 = vmatpush.bf16.msra.mxu0 0
    %564 = vmatpush.bf16.msra.mxu0 0
    %565 = vmatpush.bf16.msra.mxu0 0
    %566 = vmatpush.bf16.msra.mxu0 %v551
    %567 = vmatpush.bf16.msra.mxu0 %v549
    %568 = vmatmul.bf16.gmra.mxu0 %v555
    %v569 = vpop.f32.mrf.mxu0
    %v570 = vadd.f32 0.0, %v569
    %v571 = vpop.f32.mrf.mxu0
    %v572 = vadd.f32 0.0, %v571
    %573 = vmatmul.bf16.gmra.mxu0 %v558
    %v574 = vpop.f32.mrf.mxu0
    %v575 = vadd.f32 0.0, %v574
    %v576 = vpop.f32.mrf.mxu0
    %v577 = vadd.f32 0.0, %v576
    %578 = vdwg.mxu0
    %v583 = vunpack.c.l.b16 %v489
    %v584 = vunpack.c.l.b16 %v490
    %v585 = vunpack.c.l.b16 %v491
    %v586 = vunpack.c.l.b16 %v492
    %v587 = vpack.c.b16 %v584, %v583
    %v588 = vpack.c.b16 %v586, %v585
    %589 = vrot.lane.b32.xlu0 %v227, 64
    %v590 = vpop.permute.xlu0 %589
    %591 = vrot.lane.b32.xlu0 %v228, 64
    %v592 = vpop.permute.xlu0 %591
    %v596 = vsel %vm82, %v587, 0
    %v599 = vsel %vm82, %v588, 0
    %601 = vmatpush.bf16.msra.mxu0 0
    %602 = vmatpush.bf16.msra.mxu0 0
    %603 = vmatpush.bf16.msra.mxu0 0
    %604 = vmatpush.bf16.msra.mxu0 0
    %605 = vmatpush.bf16.msra.mxu0 0
    %606 = vmatpush.bf16.msra.mxu0 0
    %607 = vmatpush.bf16.msra.mxu0 %v592
    %608 = vmatpush.bf16.msra.mxu0 %v590
    %609 = vmatmul.bf16.gmra.mxu0 %v596
    %v610 = vpop.f32.mrf.mxu0
    %v611 = vadd.f32 0.0, %v610
    %v612 = vpop.f32.mrf.mxu0
    %v613 = vadd.f32 0.0, %v612
    %614 = vmatmul.bf16.gmra.mxu0 %v599
    %v615 = vpop.f32.mrf.mxu0
    %v616 = vadd.f32 0.0, %v615
    %v617 = vpop.f32.mrf.mxu0
    %v618 = vadd.f32 0.0, %v617
    %619 = vdwg.mxu0
    %v624 = vunpack.c.l.b16 %v493
    %v625 = vunpack.c.l.b16 %v494
    %v626 = vunpack.c.l.b16 %v495
    %v627 = vunpack.c.l.b16 %v496
    %v628 = vpack.c.b16 %v625, %v624
    %v629 = vpack.c.b16 %v627, %v626
    %630 = vrot.lane.b32.xlu0 %v268, 64
    %v631 = vpop.permute.xlu0 %630
    %632 = vrot.lane.b32.xlu0 %v269, 64
    %v633 = vpop.permute.xlu0 %632
    %v637 = vsel %vm82, %v628, 0
    %v640 = vsel %vm82, %v629, 0
    %642 = vmatpush.bf16.msra.mxu0 0
    %643 = vmatpush.bf16.msra.mxu0 0
    %644 = vmatpush.bf16.msra.mxu0 0
    %645 = vmatpush.bf16.msra.mxu0 0
    %646 = vmatpush.bf16.msra.mxu0 0
    %647 = vmatpush.bf16.msra.mxu0 0
    %648 = vmatpush.bf16.msra.mxu0 %v633
    %649 = vmatpush.bf16.msra.mxu0 %v631
    %650 = vmatmul.bf16.gmra.mxu0 %v637
    %v651 = vpop.f32.mrf.mxu0
    %v652 = vadd.f32 0.0, %v651
    %v653 = vpop.f32.mrf.mxu0
    %v654 = vadd.f32 0.0, %v653
    %655 = vmatmul.bf16.gmra.mxu0 %v640
    %v656 = vpop.f32.mrf.mxu0
    %v657 = vadd.f32 0.0, %v656
    %v658 = vpop.f32.mrf.mxu0
    %v659 = vadd.f32 0.0, %v658
    %660 = vdwg.mxu0
    %665 = vrot.lane.b32.xlu0 %v570, 8
    %v666 = vpop.permute.xlu0 %665
    %667 = vrot.lane.b32.xlu0 %v572, 8
    %v668 = vpop.permute.xlu0 %667
    %669 = vrot.lane.b32.xlu0 %v575, 8
    %v670 = vpop.permute.xlu0 %669
    %671 = vrot.lane.b32.xlu0 %v577, 8
    %v672 = vpop.permute.xlu0 %671
    %681 = vrot.lane.b32.xlu0 %v611, 16
    %v682 = vpop.permute.xlu0 %681
    %683 = vrot.lane.b32.xlu0 %v613, 16
    %v684 = vpop.permute.xlu0 %683
    %685 = vrot.lane.b32.xlu0 %v616, 16
    %v686 = vpop.permute.xlu0 %685
    %687 = vrot.lane.b32.xlu0 %v618, 16
    %v688 = vpop.permute.xlu0 %687
    %697 = vrot.lane.b32.xlu0 %v652, 24
    %v698 = vpop.permute.xlu0 %697
    %699 = vrot.lane.b32.xlu0 %v654, 24
    %v700 = vpop.permute.xlu0 %699
    %701 = vrot.lane.b32.xlu0 %v657, 24
    %v702 = vpop.permute.xlu0 %701
    %703 = vrot.lane.b32.xlu0 %v659, 24
    %v704 = vpop.permute.xlu0 %703
    %v709 = vsel %vm150, %v529, %v666
    %v710 = vsel %vm150, %v531, %v668
    %v711 = vsel %vm150, %v534, %v670
    %v712 = vsel %vm150, %v536, %v672
    %vm713 = vcmask 130048
    %v714 = vsel %vm713, %v709, %v682
    %v715 = vsel %vm713, %v710, %v684
    %v716 = vsel %vm713, %v711, %v686
    %v717 = vsel %vm713, %v712, %v688
    %vm718 = vcmask 195584
    %v719 = vsel %vm718, %v714, %v698
    %v720 = vsel %vm718, %v715, %v700
    %v721 = vsel %vm718, %v716, %v702
    %v722 = vsel %vm718, %v717, %v704
    %v723 = vadd.f32 %v56, %v719
    %v724 = vadd.f32 %v57, %v720
    %v725 = vadd.f32 %v58, %v721
    %v726 = vadd.f32 %v59, %v722
    %v727 = vsel %vm82, %v723, 0.0
    %v728 = vsel %vm82, %v724, 0.0
    %v729 = vadd.f32 %v727, %v728
    %v730 = vsel %vm82, %v725, 0.0
    %v731 = vadd.f32 %v729, %v730
    %v732 = vsel %vm82, %v726, 0.0
    %v733 = vadd.f32 %v731, %v732
    %v734 = vrot.slane %v733, 4
    %v735 = vadd.f32 %v733, %v734
    %v736 = vrot.slane %v735, 2
    %v737 = vadd.f32 %v735, %v736
    %v738 = vrot.slane %v737, 1
    %v739 = vadd.f32 %v737, %v738
    %v740 = vmul.f32 %v739, 0.03125
    %v741 = vmul.f32 %v723, %v723
    %v742 = vmul.f32 %v724, %v724
    %v743 = vmul.f32 %v725, %v725
    %v744 = vmul.f32 %v726, %v726
    %v745 = vsel %vm82, %v741, 0.0
    %v746 = vsel %vm82, %v742, 0.0
    %v747 = vadd.f32 %v745, %v746
    %v748 = vsel %vm82, %v743, 0.0
    %v749 = vadd.f32 %v747, %v748
    %v750 = vsel %vm82, %v744, 0.0
    %v751 = vadd.f32 %v749, %v750
    %v752 = vrot.slane %v751, 4
    %v753 = vadd.f32 %v751, %v752
    %v754 = vrot.slane %v753, 2
    %v755 = vadd.f32 %v753, %v754
    %v756 = vrot.slane %v755, 1
    %v757 = vadd.f32 %v755, %v756
    %v758 = vmul.f32 %v757, 0.03125
    %v759 = vmul.f32 %v740, %v740
    %v760 = vsub.f32 %v758, %v759
    %v761 = vmax.f32 %v760, 0.0
    %v762 = vadd.f32 %v761, 1e-05
    %v763 = vrsqrt.pop %v762
    %v764 = vmul.f32 %v763, %v762
    %v765 = vmul.f32 %v764, %v763
    %v766 = vmul.f32 0.5, %v765
    %v767 = vsub.f32 1.5, %v766
    %v768 = vmul.f32 %v763, %v767
    %vm769 = vweird.f32 %v762
    %vm770 = vweird.f32 %v763
    %vm771 = vmor %vm769, %vm770
    %v772 = vsel %vm771, %v763, %v768
    %v773 = vld [vmem:[%s3] sm:$0x1]
    %v774 = vmul.f32 %v772, %v773
    %v775 = vsub.f32 %v723, %v740
    %v776 = vsub.f32 %v724, %v740
    %v777 = vsub.f32 %v725, %v740
    %v778 = vsub.f32 %v726, %v740
    %v779 = vperm.slane %v774, 0
    %v780 = vmul.f32 %v775, %v779
    %v781 = vmul.f32 %v776, %v779
    %v782 = vmul.f32 %v777, %v779
    %v783 = vmul.f32 %v778, %v779
    %v784 = vld [vmem:[%s4] sm:$0x1]
    %v786 = vperm.slane %v784, 0
    %v788 = vadd.f32 %v780, %v786
    %v789 = vadd.f32 %v781, %v786
    %v790 = vadd.f32 %v782, %v786
    %v791 = vadd.f32 %v783, %v786
    %v792 = vpack.c.bf16 %v789, %v788
    %v793 = vpack.c.bf16 %v791, %v790
    %v794 = vld [vmem:[#allocation2] sm:$0xf]
    %v795 = vld [vmem:[#allocation2 + $0x4] sm:$0xf]
    %v796 = vld [vmem:[#allocation2 + $0x8] sm:$0xf]
    %v797 = vld [vmem:[#allocation2 + $0xc] sm:$0xf]
    %v798 = vld [vmem:[%s6] sm:$0x1]
    %v800 = vperm.slane %v798, 0
    %v806 = vunpack.c.l.b16 %v794
    %v807 = vunpack.c.l.b16 %v795
    %v808 = vunpack.c.l.b16 %v796
    %v809 = vunpack.c.l.b16 %v797
    %v810 = vpack.c.b16 %v807, %v806
    %v811 = vpack.c.b16 %v809, %v808
    %v815 = vsel %vm82, %v792, 0
    %v818 = vsel %vm82, %v793, 0
    %820 = vmatpush.bf16.msra.mxu0 0
    %821 = vmatpush.bf16.msra.mxu0 0
    %822 = vmatpush.bf16.msra.mxu0 0
    %823 = vmatpush.bf16.msra.mxu0 0
    %824 = vmatpush.bf16.msra.mxu0 0
    %825 = vmatpush.bf16.msra.mxu0 0
    %826 = vmatpush.bf16.msra.mxu0 %v811
    %827 = vmatpush.bf16.msra.mxu0 %v810
    %828 = vmatmul.bf16.gmra.mxu0 %v815
    %v829 = vpop.f32.mrf.mxu0
    %v830 = vadd.f32 %v800, %v829
    %v831 = vpop.f32.mrf.mxu0
    %v832 = vadd.f32 %v800, %v831
    %833 = vmatmul.bf16.gmra.mxu0 %v818
    %v834 = vpop.f32.mrf.mxu0
    %v835 = vadd.f32 %v800, %v834
    %v836 = vpop.f32.mrf.mxu0
    %v837 = vadd.f32 %v800, %v836
    %838 = vdwg.mxu0
    %v839 = vmax.f32 %v830, 0.0
    %v840 = vmax.f32 %v832, 0.0
    %v841 = vmax.f32 %v835, 0.0
    %v842 = vmax.f32 %v837, 0.0
    %v843 = vpack.c.bf16 %v840, %v839
    %v844 = vpack.c.bf16 %v842, %v841
    %v845 = vld [vmem:[%s7] sm:$0xf]
    %v846 = vld [vmem:[%s7 + $0x4] sm:$0xf]
    %v847 = vld [vmem:[%s7 + $0x8] sm:$0xf]
    %v848 = vld [vmem:[%s7 + $0xc] sm:$0xf]
    %v849 = vld [vmem:[%s7 + $0x10] sm:$0xf]
    %v850 = vld [vmem:[%s7 + $0x14] sm:$0xf]
    %v851 = vld [vmem:[%s7 + $0x18] sm:$0xf]
    %v852 = vld [vmem:[%s7 + $0x1c] sm:$0xf]
    %v853 = vld [vmem:[%s8] sm:$0x1]
    %v855 = vperm.slane %v853, 0
    %v865 = vunpack.c.l.b16 %v845
    %v866 = vunpack.c.l.b16 %v846
    %v867 = vunpack.c.l.b16 %v847
    %v868 = vunpack.c.l.b16 %v848
    %v869 = vunpack.c.l.b16 %v849
    %v870 = vunpack.c.l.b16 %v850
    %v871 = vunpack.c.l.b16 %v851
    %v872 = vunpack.c.l.b16 %v852
    %v873 = vpack.c.b16 %v866, %v865
    %v874 = vpack.c.b16 %v868, %v867
    %v875 = vpack.c.b16 %v870, %v869
    %v876 = vpack.c.b16 %v872, %v871
    %vm881 = vcmask 523264
    %v883 = vsel %vm881, %v843, 0
    %v886 = vsel %vm881, %v844, 0
    %888 = vmatpush.bf16.msra.mxu0 0
    %889 = vmatpush.bf16.msra.mxu0 0
    %890 = vmatpush.bf16.msra.mxu0 0
    %891 = vmatpush.bf16.msra.mxu0 0
    %892 = vmatpush.bf16.msra.mxu0 %v876
    %893 = vmatpush.bf16.msra.mxu0 %v875
    %894 = vmatpush.bf16.msra.mxu0 %v874
    %895 = vmatpush.bf16.msra.mxu0 %v873
    %896 = vmatmul.bf16.gmra.mxu0 %v883
    %v897 = vpop.f32.mrf.mxu0
    %v898 = vadd.f32 %v855, %v897
    %v899 = vpop.f32.mrf.mxu0
    %v900 = vadd.f32 %v855, %v899
    %901 = vmatmul.bf16.gmra.mxu0 %v886
    %v902 = vpop.f32.mrf.mxu0
    %v903 = vadd.f32 %v855, %v902
    %v904 = vpop.f32.mrf.mxu0
    %v905 = vadd.f32 %v855, %v904
    %906 = vdwg.mxu0
    %v907 = vadd.f32 %v788, %v898
    %v908 = vadd.f32 %v789, %v900
    %v909 = vadd.f32 %v790, %v903
    %v910 = vadd.f32 %v791, %v905
    %v911 = vsel %vm82, %v907, 0.0
    %v912 = vsel %vm82, %v908, 0.0
    %v913 = vadd.f32 %v911, %v912
    %v914 = vsel %vm82, %v909, 0.0
    %v915 = vadd.f32 %v913, %v914
    %v916 = vsel %vm82, %v910, 0.0
    %v917 = vadd.f32 %v915, %v916
    %v918 = vrot.slane %v917, 4
    %v919 = vadd.f32 %v917, %v918
    %v920 = vrot.slane %v919, 2
    %v921 = vadd.f32 %v919, %v920
    %v922 = vrot.slane %v921, 1
    %v923 = vadd.f32 %v921, %v922
    %v924 = vmul.f32 %v923, 0.03125
    %v925 = vmul.f32 %v907, %v907
    %v926 = vmul.f32 %v908, %v908
    %v927 = vmul.f32 %v909, %v909
    %v928 = vmul.f32 %v910, %v910
    %v929 = vsel %vm82, %v925, 0.0
    %v930 = vsel %vm82, %v926, 0.0
    %v931 = vadd.f32 %v929, %v930
    %v932 = vsel %vm82, %v927, 0.0
    %v933 = vadd.f32 %v931, %v932
    %v934 = vsel %vm82, %v928, 0.0
    %v935 = vadd.f32 %v933, %v934
    %v936 = vrot.slane %v935, 4
    %v937 = vadd.f32 %v935, %v936
    %v938 = vrot.slane %v937, 2
    %v939 = vadd.f32 %v937, %v938
    %v940 = vrot.slane %v939, 1
    %v941 = vadd.f32 %v939, %v940
    %v942 = vmul.f32 %v941, 0.03125
    %v943 = vmul.f32 %v924, %v924
    %v944 = vsub.f32 %v942, %v943
    %v945 = vmax.f32 %v944, 0.0
    %v946 = vadd.f32 %v945, 1e-05
    %v947 = vrsqrt.pop %v946
    %v948 = vmul.f32 %v947, %v946
    %v949 = vmul.f32 %v948, %v947
    %v950 = vmul.f32 0.5, %v949
    %v951 = vsub.f32 1.5, %v950
    %v952 = vmul.f32 %v947, %v951
    %vm953 = vweird.f32 %v946
    %vm954 = vweird.f32 %v947
    %vm955 = vmor %vm953, %vm954
    %v956 = vsel %vm955, %v947, %v952
    %v957 = vld [vmem:[%s9] sm:$0x1]
    %v958 = vmul.f32 %v956, %v957
    %v959 = vsub.f32 %v907, %v924
    %v960 = vsub.f32 %v908, %v924
    %v961 = vsub.f32 %v909, %v924
    %v962 = vsub.f32 %v910, %v924
    %v963 = vperm.slane %v958, 0
    %v964 = vmul.f32 %v959, %v963
    %v965 = vmul.f32 %v960, %v963
    %v966 = vmul.f32 %v961, %v963
    %v967 = vmul.f32 %v962, %v963
    %v968 = vld [vmem:[%s10] sm:$0x1]
    %v970 = vperm.slane %v968, 0
    %v972 = vadd.f32 %v964, %v970
    %v973 = vadd.f32 %v965, %v970
    %v974 = vadd.f32 %v966, %v970
    %v975 = vadd.f32 %v967, %v970
    %976 = vst.msk [vmem:[#allocation5] sm:$0xff] %vm82, %v972
    %977 = vst.msk [vmem:[#allocation5 + $0x8] sm:$0xff] %vm82, %v973
    %978 = vst.msk [vmem:[#allocation5 + $0x10] sm:$0xff] %vm82, %v974
    %979 = vst.msk [vmem:[#allocation5 + $0x18] sm:$0xff] %vm82, %v975
    // Predicated region
    $region50: #{tpu_custom_call.1} parent=1 // pred_check
      _
    $region51: #{tpu_custom_call.1} parent=1 // pred_check_branch
      %981 = sbr.rel (0) target = $region53
    $region52: #{tpu_custom_call.1} parent=1 // pred_region
      %983 = vsyncadd [#allocation4], 0
      %s984 = sshll.u32 [#allocation5], 4
      %s985 = int_to_ptr.vmem [resolvable:$true] %s984
      %s986 = sshll.u32 %s11, 4
      %s987 = int_to_ptr.hbm [resolvable:$true] %s986
      %992 = dma.vmem_to_hbm [thread:$0]  %s985, 512, %s987, [#allocation4], 128, 128, 8
    $region53: #{tpu_custom_call.1} parent=1 // pred_fallthru
      _
    // Predicated region
    $region54: #{tpu_custom_call.1} parent=1 // pred_check
      _
    $region55: #{tpu_custom_call.1} parent=1 // pred_check_branch
      %994 = sbr.rel (0) target = $region57
    $region56: #{tpu_custom_call.1} parent=1 // pred_region
      %996 = dma.done [#allocation4], 512
    $region57: #{tpu_custom_call.1} parent=1 // pred_fallthru
      _
    %997 = vsyncpa [#allocation3], 1
    %998 = vsyncpa [#allocation4], 1

</llo_original>
